<compile_context>
chip_gen: v6e
topology: v6e:2x2x1
jax: 0.10.0
libtpu: 0.0.40
codegen_flags: <defaults>
</compile_context>

<pallas_src>
import math

import jax
import jax.numpy as jnp
from jax.experimental import pallas as pl
from jax.experimental.pallas import tpu as pltpu


def _round_up(x: int, m: int) -> int:
    return (x + m - 1) // m * m


def _cdae_kernel(x_ref, m_ref, wt_ref, vt_ref, b_ref, o_ref, z_ref):
    phase = pl.program_id(1)
    step = pl.program_id(2)

    # ---- phase 0: encoder reduction over item chunks --------------------------
    #   z += (x * dropout_mask)_chunk @ Wt_chunk   (z resident in VMEM scratch)
    @pl.when(phase == 0)
    def _encode():
        @pl.when(step == 0)
        def _init():
            z_ref[...] = jnp.zeros_like(z_ref)

        wt = wt_ref[...]
        rwave = x_ref[...] * m_ref[...]              # train-mode dropout (pre-scaled mask)
        z_ref[...] += jnp.dot(rwave.astype(wt.dtype), wt,
                              preferred_element_type=jnp.float32)

    # ---- phase 1: decoder over output item chunks -----------------------------
    #   o_chunk = z @ Vt_chunk + b_chunk            (Identity activations)
    @pl.when(phase == 1)
    def _decode():
        vt = vt_ref[...]
        y = jnp.dot(z_ref[...].astype(vt.dtype), vt,
                    preferred_element_type=jnp.float32)
        o_ref[...] = (y + b_ref[...]).astype(o_ref.dtype)


def pack_params(W, V, b, *, item_tile=512, weight_dtype=jnp.bfloat16):
    """One-time weight packing: transpose, zero-pad to lane-dense multiples of 128,
    and cast to bf16.  Do NOT call per forward step."""
    H, N = W.shape                         # W: (hidden, item_nums), PyTorch layout
    assert V.shape == (N, H) and b.shape == (N,)

    n128 = _round_up(N, 128)
    tn = min(_round_up(item_tile, 128), n128)   # item tile (both passes share it)
    n_pad = _round_up(N, tn)
    h_pad = _round_up(H, 128)

    Wt = jnp.zeros((n_pad, h_pad), weight_dtype).at[:N, :H].set(W.T.astype(weight_dtype))
    Vt = jnp.zeros((h_pad, n_pad), weight_dtype).at[:H, :N].set(V.T.astype(weight_dtype))
    b2 = jnp.zeros((1, n_pad), jnp.float32).at[0, :N].set(b.astype(jnp.float32))

    return dict(Wt=Wt, Vt=Vt, b=b2, item_nums=N, hidden=H,
                n_pad=n_pad, h_pad=h_pad, tn=tn)


def cdae_forward(packed, uid, ratting_vec, *, drop_rate, rng_key=None, mask=None,
                 batch_tile=256):
    """CDAE forward.  `uid` is accepted for API parity with the PyTorch module but the
    reference Encoder.forward ignores user_id / U (and b_h), so it is unused here.
    `mask`, if given, is the already-scaled multiplicative dropout mask (shape of
    ratting_vec); otherwise it is generated from rng_key."""
    del uid

    N = packed["item_nums"]
    n_pad, h_pad, tn = packed["n_pad"], packed["h_pad"], packed["tn"]
    B = ratting_vec.shape[0]

    tm = min(_round_up(batch_tile, 8), _round_up(B, 8))   # MXU-friendly batch tile
    b_pad = _round_up(B, tm)
    n_it = n_pad // tn

    # --- dropout mask (host/XLA-side; see TODO(synk) above) ---
    if mask is None:
        if drop_rate > 0.0:
            key = rng_key if rng_key is not None else jax.random.PRNGKey(0)
            keep = jax.random.bernoulli(key, 1.0 - drop_rate, ratting_vec.shape)
            mask = keep.astype(jnp.float32) / (1.0 - drop_rate)
        else:
            mask = jnp.ones(ratting_vec.shape, jnp.float32)

    # --- pad activations to the tiled, lane-dense shape ---
    x_p = jnp.zeros((b_pad, n_pad), jnp.float32).at[:B, :N].set(
        ratting_vec.astype(jnp.float32))
    m_p = jnp.zeros((b_pad, n_pad), jnp.float32).at[:B, :N].set(
        mask.astype(jnp.float32))

    w_itemsize = jnp.dtype(packed["Wt"].dtype).itemsize
    flops = 2 * b_pad * n_pad * h_pad * 2
    bytes_accessed = (x_p.size * 4 + m_p.size * 4
                      + packed["Wt"].size * w_itemsize
                      + packed["Vt"].size * w_itemsize
                      + packed["b"].size * 4
                      + b_pad * n_pad * 4)

    # During phase 1 the x / Wt streams are clamped to their last phase-0 block so no
    # extra DMA is issued; Vt / b / out are clamped to block 0 during phase 0.
    def xm_map(i, p, t):
        return (i, t * (1 - p) + (n_it - 1) * p)

    def wt_map(i, p, t):
        return (t * (1 - p) + (n_it - 1) * p, 0)

    def vt_map(i, p, t):
        return (0, t * p)

    def b_map(i, p, t):
        return (0, t * p)

    def o_map(i, p, t):
        return (i, t * p)

    out = pl.pallas_call(
        _cdae_kernel,
        out_shape=jax.ShapeDtypeStruct((b_pad, n_pad), jnp.float32),
        grid=(b_pad // tm, 2, n_it),
        in_specs=[
            pl.BlockSpec((tm, tn), xm_map),        # x
            pl.BlockSpec((tm, tn), xm_map),        # dropout mask
            pl.BlockSpec((tn, h_pad), wt_map),     # W^T chunk (bf16)
            pl.BlockSpec((h_pad, tn), vt_map),     # V^T chunk (bf16)
            pl.BlockSpec((1, tn), b_map),          # bias chunk
        ],
        out_specs=pl.BlockSpec((tm, tn), o_map),
        scratch_shapes=[pltpu.VMEM((tm, h_pad), jnp.float32)],   # resident z
        compiler_params=pltpu.CompilerParams(
            dimension_semantics=("parallel", "arbitrary", "arbitrary"),
            vmem_limit_bytes=32 * 1024 * 1024,
        ),
        cost_estimate=pl.CostEstimate(
            flops=flops, transcendentals=0, bytes_accessed=bytes_accessed),
    )(x_p, m_p, packed["Wt"], packed["Vt"], packed["b"])

    return out[:B, :N]


def init_params(key, user_nums, item_nums, hidden_dimension):
    """Deterministic init matching the PyTorch module's shapes/scales
    (torch.rand * 4*sqrt(6/(in+out)) -> uniform[0, scale))."""
    scale = 4.0 * math.sqrt(6.0 / (item_nums + hidden_dimension))
    k_w, k_v, k_u = jax.random.split(key, 3)
    W = jax.random.uniform(k_w, (hidden_dimension, item_nums), jnp.float32) * scale
    V = jax.random.uniform(k_v, (item_nums, hidden_dimension), jnp.float32) * scale
    b = jnp.zeros((item_nums,), jnp.float32)
    # b_h and U exist in the module but are unused in forward; kept for shape parity.
    b_h = jnp.zeros((hidden_dimension,), jnp.float32)
    U = jax.random.uniform(k_u, (user_nums, hidden_dimension), jnp.float32) * scale
    return dict(W=W, V=V, b=b, b_h=b_h, U=U)


if __name__ == "__main__":
    user_nums = 16
    item_nums = 256
    hidden_dimension = 128
    drop_rate = 0.2
    batch = 8

    key = jax.random.PRNGKey(0)
    k_params, k_x, k_uid, k_drop = jax.random.split(key, 4)
    params = init_params(k_params, user_nums, item_nums, hidden_dimension)
    packed = pack_params(params["W"], params["V"], params["b"])   # one-time packing

    ratting_vec = (jax.random.uniform(k_x, (batch, item_nums), jnp.float32) < 0.1
                   ).astype(jnp.float32)   # sparse implicit-feedback style ratings
    uid = jax.random.randint(k_uid, (batch,), 0, user_nums, dtype=jnp.int32)

    # Explicit (pre-scaled) dropout mask so we can also build a pure-JAX reference.
    keep = jax.random.bernoulli(k_drop, 1.0 - drop_rate, ratting_vec.shape)
    mask = keep.astype(jnp.float32) / (1.0 - drop_rate)

    out = cdae_forward(packed, uid, ratting_vec, drop_rate=drop_rate, mask=mask)
    out = jax.block_until_ready(out)

    # Pure-JAX reference with the same bf16-quantized weights and the same mask.
    N, H = item_nums, hidden_dimension
    Wt_f32 = packed["Wt"][:N, :H].astype(jnp.float32)
    Vt_f32 = packed["Vt"][:H, :N].astype(jnp.float32)
    rwave = ratting_vec * mask
    ref = (rwave @ Wt_f32) @ Vt_f32 + params["b"][None, :]

    assert out.shape == (batch, item_nums)
    assert out.dtype == jnp.float32
    assert bool(jnp.all(jnp.isfinite(out)))
    assert bool(jnp.allclose(out, ref, rtol=5e-2, atol=5e-1)), \
        float(jnp.max(jnp.abs(out - ref)))
    print("KERNEL_OK")
</pallas_src>

<mosaic_0001>
module attributes {stable_mosaic.version = 11 : i64} {
  func.func @_cdae_kernel(%arg0: i32, %arg1: i32, %arg2: i32, %arg3: memref<8x256xf32, #tpu.memory_space<vmem>>, %arg4: memref<8x256xf32, #tpu.memory_space<vmem>>, %arg5: memref<256x128xbf16, #tpu.memory_space<vmem>>, %arg6: memref<128x256xbf16, #tpu.memory_space<vmem>>, %arg7: memref<1x256xf32, #tpu.memory_space<vmem>>, %arg8: memref<8x256xf32, #tpu.memory_space<vmem>>, %arg9: memref<8x128xf32, #tpu.memory_space<vmem>>) attributes {dimension_semantics = [#tpu.dimension_semantics<parallel>, #tpu.dimension_semantics<arbitrary>, #tpu.dimension_semantics<arbitrary>], iteration_bounds = array<i64: 1, 2, 1>, scalar_prefetch = 0 : i64, scratch_operands = 1 : i64, tpu.core_type = #tpu.core_type<tc>, window_params = [{transform_indices = @transform_0, window_bounds = array<i64: 8, 256>}, {transform_indices = @transform_1, window_bounds = array<i64: 8, 256>}, {transform_indices = @transform_2, window_bounds = array<i64: 256, 128>}, {transform_indices = @transform_3, window_bounds = array<i64: 128, 256>}, {transform_indices = @transform_4, window_bounds = array<i64: 1, 256>}, {transform_indices = @transform_5, window_bounds = array<i64: 8, 256>}]} {
    %c0_i32 = arith.constant 0 : i32
    %0 = arith.cmpi eq, %arg1, %c0_i32 : i32
    %1 = arith.extui %0 : i1 to i32
    %c0_i32_0 = arith.constant 0 : i32
    %2 = arith.cmpi ne, %1, %c0_i32_0 : i32
    scf.if %2 {
      %c0_i32_2 = arith.constant 0 : i32
      %6 = arith.cmpi eq, %arg2, %c0_i32_2 : i32
      %7 = arith.extui %6 : i1 to i32
      %c0_i32_3 = arith.constant 0 : i32
      %8 = arith.cmpi ne, %7, %c0_i32_3 : i32
      scf.if %8 {
        %cst_13 = arith.constant 0.000000e+00 : f32
        %18 = vector.broadcast %cst_13 : f32 to vector<8x128xf32>
        %c0_14 = arith.constant 0 : index
        %c0_15 = arith.constant 0 : index
        %19 = vector.load %arg9[%c0_14, %c0_15] : memref<8x128xf32, #tpu.memory_space<vmem>>, vector<8x128xf32>
        tpu.vector_store %arg9[%c0_14, %c0_15], %18 {strides = array<i32>} : memref<8x128xf32, #tpu.memory_space<vmem>>, vector<8x128xf32>,
      } else {
      }
      %c0 = arith.constant 0 : index
      %c0_4 = arith.constant 0 : index
      %9 = vector.load %arg5[%c0, %c0_4] : memref<256x128xbf16, #tpu.memory_space<vmem>>, vector<256x128xbf16>
      %c0_5 = arith.constant 0 : index
      %c0_6 = arith.constant 0 : index
      %10 = vector.load %arg3[%c0_5, %c0_6] : memref<8x256xf32, #tpu.memory_space<vmem>>, vector<8x256xf32>
      %c0_7 = arith.constant 0 : index
      %c0_8 = arith.constant 0 : index
      %11 = vector.load %arg4[%c0_7, %c0_8] : memref<8x256xf32, #tpu.memory_space<vmem>>, vector<8x256xf32>
      %12 = arith.mulf %10, %11 : vector<8x256xf32>
      %c0_9 = arith.constant 0 : index
      %c0_10 = arith.constant 0 : index
      %13 = vector.load %arg9[%c0_9, %c0_10] : memref<8x128xf32, #tpu.memory_space<vmem>>, vector<8x128xf32>
      %14 = arith.truncf %12 : vector<8x256xf32> to vector<8x256xbf16>
      %cst = arith.constant dense<0.000000e+00> : vector<8x128xf32>
      %15 = tpu.matmul %14, %9, %cst {dimension_numbers = #tpu.dot_dimension_numbers<[1], [0], [0], [1], [0, 0, 1, 1], [], []>} : vector<8x256xbf16>, vector<256x128xbf16>, vector<8x128xf32> -> vector<8x128xf32>
      %16 = arith.addf %13, %15 : vector<8x128xf32>
      %c0_11 = arith.constant 0 : index
      %c0_12 = arith.constant 0 : index
      %17 = vector.load %arg9[%c0_11, %c0_12] : memref<8x128xf32, #tpu.memory_space<vmem>>, vector<8x128xf32>
      tpu.vector_store %arg9[%c0_11, %c0_12], %16 {strides = array<i32>} : memref<8x128xf32, #tpu.memory_space<vmem>>, vector<8x128xf32>,
    } else {
    }
    %c1_i32 = arith.constant 1 : i32
    %3 = arith.cmpi eq, %arg1, %c1_i32 : i32
    %4 = arith.extui %3 : i1 to i32
    %c0_i32_1 = arith.constant 0 : i32
    %5 = arith.cmpi ne, %4, %c0_i32_1 : i32
    scf.if %5 {
      %c0 = arith.constant 0 : index
      %c0_2 = arith.constant 0 : index
      %6 = vector.load %arg6[%c0, %c0_2] : memref<128x256xbf16, #tpu.memory_space<vmem>>, vector<128x256xbf16>
      %c0_3 = arith.constant 0 : index
      %c0_4 = arith.constant 0 : index
      %7 = vector.load %arg9[%c0_3, %c0_4] : memref<8x128xf32, #tpu.memory_space<vmem>>, vector<8x128xf32>
      %8 = arith.truncf %7 : vector<8x128xf32> to vector<8x128xbf16>
      %cst = arith.constant dense<0.000000e+00> : vector<8x256xf32>
      %9 = tpu.matmul %8, %6, %cst {dimension_numbers = #tpu.dot_dimension_numbers<[1], [0], [0], [1], [0, 0, 1, 1], [], []>} : vector<8x128xbf16>, vector<128x256xbf16>, vector<8x256xf32> -> vector<8x256xf32>
      %c0_5 = arith.constant 0 : index
      %c0_6 = arith.constant 0 : index
      %10 = vector.load %arg7[%c0_5, %c0_6] : memref<1x256xf32, #tpu.memory_space<vmem>>, vector<1x256xf32>
      %11 = vector.broadcast %10 : vector<1x256xf32> to vector<8x256xf32>
      %12 = arith.addf %9, %11 : vector<8x256xf32>
      %c0_7 = arith.constant 0 : index
      %c0_8 = arith.constant 0 : index
      %13 = vector.load %arg8[%c0_7, %c0_8] : memref<8x256xf32, #tpu.memory_space<vmem>>, vector<8x256xf32>
      tpu.vector_store %arg8[%c0_7, %c0_8], %12 {strides = array<i32>} : memref<8x256xf32, #tpu.memory_space<vmem>>, vector<8x256xf32>,
    } else {
    }
    return
  }
  func.func @transform_0(%arg0: i32, %arg1: i32, %arg2: i32) -> (i32, i32) {
    %c1_i32 = arith.constant 1 : i32
    %0 = arith.subi %c1_i32, %arg1 : i32
    %1 = arith.muli %arg2, %0 : i32
    %c0_i32 = arith.constant 0 : i32
    %2 = arith.muli %c0_i32, %arg1 : i32
    %3 = arith.addi %1, %2 : i32
    %c0_i32_0 = arith.constant 0 : i32
    return %arg0, %3 : i32, i32
  }
  func.func @transform_1(%arg0: i32, %arg1: i32, %arg2: i32) -> (i32, i32) {
    %c1_i32 = arith.constant 1 : i32
    %0 = arith.subi %c1_i32, %arg1 : i32
    %1 = arith.muli %arg2, %0 : i32
    %c0_i32 = arith.constant 0 : i32
    %2 = arith.muli %c0_i32, %arg1 : i32
    %3 = arith.addi %1, %2 : i32
    %c0_i32_0 = arith.constant 0 : i32
    return %arg0, %3 : i32, i32
  }
  func.func @transform_2(%arg0: i32, %arg1: i32, %arg2: i32) -> (i32, i32) {
    %c1_i32 = arith.constant 1 : i32
    %0 = arith.subi %c1_i32, %arg1 : i32
    %1 = arith.muli %arg2, %0 : i32
    %c0_i32 = arith.constant 0 : i32
    %2 = arith.muli %c0_i32, %arg1 : i32
    %3 = arith.addi %1, %2 : i32
    %c0_i32_0 = arith.constant 0 : i32
    %c0_i32_1 = arith.constant 0 : i32
    return %3, %c0_i32_0 : i32, i32
  }
  func.func @transform_3(%arg0: i32, %arg1: i32, %arg2: i32) -> (i32, i32) {
    %0 = arith.muli %arg2, %arg1 : i32
    %c0_i32 = arith.constant 0 : i32
    %c0_i32_0 = arith.constant 0 : i32
    return %c0_i32, %0 : i32, i32
  }
  func.func @transform_4(%arg0: i32, %arg1: i32, %arg2: i32) -> (i32, i32) {
    %0 = arith.muli %arg2, %arg1 : i32
    %c0_i32 = arith.constant 0 : i32
    %c0_i32_0 = arith.constant 0 : i32
    return %c0_i32, %0 : i32, i32
  }
  func.func @transform_5(%arg0: i32, %arg1: i32, %arg2: i32) -> (i32, i32) {
    %0 = arith.muli %arg2, %arg1 : i32
    %c0_i32 = arith.constant 0 : i32
    return %arg0, %0 : i32, i32
  }
}

</mosaic_0001>

<llo_original>
// kernel: tpu_custom_call.1
$region0: #{tpu_custom_call.1}
  #allocation0 [shape = 'u32[]', space=smem, size = 0x4, offset = 0x4, fixed_abs, tag = 'smem constant byte address 0x4 - core index']
  #allocation1 [shape = 'u32[144,128]{1,0:T(1,128)}', space=vmem, size = 0x12000, scoped, tag = 'internal scratch']
  #allocation2 [shape = 'f32[8,128]{1,0:T(8,128)}', space=vmem, size = 0x1000, scoped, tag = 'scratch operand']
  %s0 = inlined_call_operand.hbm [shape: f32[8,256], index: 0, kind: input, shape index: {}]
  %s1 = inlined_call_operand.hbm [shape: f32[8,256], index: 1, kind: input, shape index: {}]
  %s2 = inlined_call_operand.hbm [shape: bf16[256,128], index: 2, kind: input, shape index: {}]
  %s3 = inlined_call_operand.hbm [shape: bf16[128,256], index: 3, kind: input, shape index: {}]
  %s4 = inlined_call_operand.vmem [shape: f32[1,256], index: 4, kind: input, shape index: {}]
  %s5 = inlined_call_operand.hbm [shape: f32[8,256], index: 5, kind: output, shape index: {}]
  %s6 = sld [smem:[#allocation0]]
  $region81: #{tpu_custom_call.1} parent=0
    _
  %s8 = ssub.s32 1, %s6
  %s9 = scalar_select 0, %s8, %s6
  $region1: #{tpu_custom_call.1} parent=0
    #allocation3 [shape = 'u8[16384]{0}', space=vmem, size = 0x4000, scoped, tag = 'input window, operand 0']
    #allocation4 [shape = 's32[2]{0}', space=sflag, size = 0x8, scoped, tag = 'scoped memory for tpu_custom_call.1']
    #allocation5 [shape = 's32[2]{0}', space=sflag, size = 0x8, scoped, tag = 'scoped memory for tpu_custom_call.1']
    #allocation6 [shape = 'u8[16384]{0}', space=vmem, size = 0x4000, scoped, tag = 'input window, operand 1']
    #allocation7 [shape = 's32[2]{0}', space=sflag, size = 0x8, scoped, tag = 'scoped memory for tpu_custom_call.1']
    #allocation8 [shape = 'u8[131072]{0}', space=vmem, size = 0x20000, scoped, tag = 'input window, operand 2']
    #allocation9 [shape = 'u8[131072]{0}', space=vmem, size = 0x20000, scoped, tag = 'input window, operand 3']
    #allocation10 [shape = 's32[2]{0}', space=sflag, size = 0x8, scoped, tag = 'scoped memory for tpu_custom_call.1']
    #allocation11 [shape = 'u8[16384]{0}', space=vmem, size = 0x4000, scoped, tag = 'output window, operand 0']
    %10 = vsyncpa [#allocation4], 0
    %s11 = scalar_lea.sflag [#allocation4], 1
    %12 = vsyncpa %s11, 0
    %13 = vsyncpa [#allocation7], 0
    %s14 = scalar_lea.sflag [#allocation7], 1
    %15 = vsyncpa %s14, 0
    %16 = vsyncpa [#allocation10], 0
    %s17 = scalar_lea.sflag [#allocation10], 1
    %18 = vsyncpa %s17, 0
    %19 = vsyncpa [#allocation5], 0
    %s20 = scalar_lea.sflag [#allocation5], 1
    %21 = vsyncpa %s20, 0
    loop: start=0, step=1, limit=4
    $region2: #{tpu_custom_call.1} parent=1 // loop_pre_header
      _
    $region3: #{tpu_custom_call.1} parent=1 // loop_header
      %s23 = sphi 0, %s27
      %p24 = scmp.ge.s32.totalorder %s23, 4
      %s30 = sphi 0, %s49
      %s31 = sphi 0, %s45
      %s32 = sphi 0, %s41
      %s33 = sphi 0, %s30
      %s34 = sphi 0, %s31
      %s35 = sphi 0, %s32
      %s36 = sphi 0, %s33
      %s37 = sphi 0, %s34
      %s38 = sphi 0, %s35
      %s58 = sphi 0, %s60
      %s61 = sphi 0, %s58
      %s62 = sphi 0, %s61
      %s78 = sphi 0, %s62
      %s90 = sphi 0, %s92
      %s93 = sphi 0, %s90
      %s94 = sphi 0, %s93
      %s110 = sphi 0, %s94
      %s120 = sphi 0, %s122
      %s123 = sphi 0, %s120
      %s124 = sphi 0, %s123
      %s140 = sphi 0, %s124
      %s148 = sphi 0, %s150
      %s151 = sphi 0, %s148
      %s152 = sphi 0, %s151
      %s168 = sphi 0, %s152
      %s176 = sphi 0, %s178
      %s179 = sphi 0, %s176
      %s180 = sphi 0, %s179
      %s196 = sphi 0, %s180
      %s206 = sphi 0, %s208
      %s209 = sphi 0, %s206
      %s210 = sphi 0, %s209
      %s226 = sphi 0, %s210
    $region4: #{tpu_custom_call.1} parent=1 // loop_header_branch
      %26 = sbr.rel (%p24) target = $region8
    $region5: #{tpu_custom_call.1} parent=1 // loop_body
      %s28 = ssub.s32 %s23, 1
      %s29 = ssub.s32 %s23, 2
      %s39 = sadd.s32 1, %s32
      %p40 = scmp.ge.s32.totalorder %s39, 1
      %s41 = scalar_select %p40, 0, %s39
      %s42 = sadd.s32 1, %s31
      %s43 = scalar_select %p40, %s42, %s31
      %p44 = scmp.ge.s32.totalorder %s43, 2
      %s45 = scalar_select %p44, 0, %s43
      %s46 = sadd.s32 1, %s30
      %s47 = scalar_select %p44, %s46, %s30
      %p48 = scmp.ge.s32.totalorder %s47, 1
      %s49 = scalar_select %p48, 0, %s47
      %s50 = ssub.s32 1, %s31
      %s51 = smul.u32 %s32, %s50
      %s52 = ssub.s32 1, %s45
      %s53 = smul.u32 %s41, %s52
      %s54 = ssub.s32 %s30, %s49
      %s55 = ssub.s32 %s51, %s53
      %s56 = sor.u32 %s54, %s55
      %p57 = scmp.eq.s32.totalorder %s56, 0
      %s59 = sadd.s32 %s58, 1
      %s60 = scalar_select %p57, %s58, %s59
      %p63 = pneg %p57
      %p64 = scmp.eq.s32.totalorder %s23, 1
      %p65 = por %p63, %p64
      %p66 = scmp.ne.s32.totalorder %s58, %s61
      %p67 = scmp.eq.s32.totalorder %s23, 0
      %p68 = por %p66, %p67
      %p69 = scmp.ne.s32.totalorder %s58, %s61
      %p70 = scmp.eq.s32.totalorder %s28, 1
      %p71 = por %p69, %p70
      %p72 = scmp.ne.s32.totalorder %s61, %s62
      %p73 = scmp.eq.s32.totalorder %s28, 0
      %p74 = por %p72, %p73
      %p75 = scmp.ne.s32.totalorder %s61, %s62
      %p76 = scmp.eq.s32.totalorder %s29, 1
      %p77 = por %p75, %p76
      %p79 = scmp.ne.s32.totalorder %s62, %s78
      %p80 = scmp.eq.s32.totalorder %s29, 0
      %p81 = por %p79, %p80
      %s82 = ssub.s32 1, %s31
      %s83 = smul.u32 %s32, %s82
      %s84 = ssub.s32 1, %s45
      %s85 = smul.u32 %s41, %s84
      %s86 = ssub.s32 %s30, %s49
      %s87 = ssub.s32 %s83, %s85
      %s88 = sor.u32 %s86, %s87
      %p89 = scmp.eq.s32.totalorder %s88, 0
      %s91 = sadd.s32 %s90, 1
      %s92 = scalar_select %p89, %s90, %s91
      %p95 = pneg %p89
      %p96 = scmp.eq.s32.totalorder %s23, 1
      %p97 = por %p95, %p96
      %p98 = scmp.ne.s32.totalorder %s90, %s93
      %p99 = scmp.eq.s32.totalorder %s23, 0
      %p100 = por %p98, %p99
      %p101 = scmp.ne.s32.totalorder %s90, %s93
      %p102 = scmp.eq.s32.totalorder %s28, 1
      %p103 = por %p101, %p102
      %p104 = scmp.ne.s32.totalorder %s93, %s94
      %p105 = scmp.eq.s32.totalorder %s28, 0
      %p106 = por %p104, %p105
      %p107 = scmp.ne.s32.totalorder %s93, %s94
      %p108 = scmp.eq.s32.totalorder %s29, 1
      %p109 = por %p107, %p108
      %p111 = scmp.ne.s32.totalorder %s94, %s110
      %p112 = scmp.eq.s32.totalorder %s29, 0
      %p113 = por %p111, %p112
      %s114 = ssub.s32 1, %s31
      %s115 = smul.u32 %s32, %s114
      %s116 = ssub.s32 1, %s45
      %s117 = smul.u32 %s41, %s116
      %s118 = ssub.s32 %s115, %s117
      %p119 = scmp.eq.s32.totalorder %s118, 0
      %s121 = sadd.s32 %s120, 1
      %s122 = scalar_select %p119, %s120, %s121
      %p125 = pneg %p119
      %p126 = scmp.eq.s32.totalorder %s23, 1
      %p127 = por %p125, %p126
      %p128 = scmp.ne.s32.totalorder %s120, %s123
      %p129 = scmp.eq.s32.totalorder %s23, 0
      %p130 = por %p128, %p129
      %p131 = scmp.ne.s32.totalorder %s120, %s123
      %p132 = scmp.eq.s32.totalorder %s28, 1
      %p133 = por %p131, %p132
      %p134 = scmp.ne.s32.totalorder %s123, %s124
      %p135 = scmp.eq.s32.totalorder %s28, 0
      %p136 = por %p134, %p135
      %p137 = scmp.ne.s32.totalorder %s123, %s124
      %p138 = scmp.eq.s32.totalorder %s29, 1
      %p139 = por %p137, %p138
      %p141 = scmp.ne.s32.totalorder %s124, %s140
      %p142 = scmp.eq.s32.totalorder %s29, 0
      %p143 = por %p141, %p142
      %s144 = smul.u32 %s32, %s31
      %s145 = smul.u32 %s41, %s45
      %s146 = ssub.s32 %s144, %s145
      %p147 = scmp.eq.s32.totalorder %s146, 0
      %s149 = sadd.s32 %s148, 1
      %s150 = scalar_select %p147, %s148, %s149
      %p153 = pneg %p147
      %p154 = scmp.eq.s32.totalorder %s23, 1
      %p155 = por %p153, %p154
      %p156 = scmp.ne.s32.totalorder %s148, %s151
      %p157 = scmp.eq.s32.totalorder %s23, 0
      %p158 = por %p156, %p157
      %p159 = scmp.ne.s32.totalorder %s148, %s151
      %p160 = scmp.eq.s32.totalorder %s28, 1
      %p161 = por %p159, %p160
      %p162 = scmp.ne.s32.totalorder %s151, %s152
      %p163 = scmp.eq.s32.totalorder %s28, 0
      %p164 = por %p162, %p163
      %p165 = scmp.ne.s32.totalorder %s151, %s152
      %p166 = scmp.eq.s32.totalorder %s29, 1
      %p167 = por %p165, %p166
      %p169 = scmp.ne.s32.totalorder %s152, %s168
      %p170 = scmp.eq.s32.totalorder %s29, 0
      %p171 = por %p169, %p170
      %s172 = smul.u32 %s32, %s31
      %s173 = smul.u32 %s41, %s45
      %s174 = ssub.s32 %s172, %s173
      %p175 = scmp.eq.s32.totalorder %s174, 0
      %s177 = sadd.s32 %s176, 1
      %s178 = scalar_select %p175, %s176, %s177
      %p181 = pneg %p175
      %p182 = scmp.eq.s32.totalorder %s23, 1
      %p183 = por %p181, %p182
      %p184 = scmp.ne.s32.totalorder %s176, %s179
      %p185 = scmp.eq.s32.totalorder %s23, 0
      %p186 = por %p184, %p185
      %p187 = scmp.ne.s32.totalorder %s176, %s179
      %p188 = scmp.eq.s32.totalorder %s28, 1
      %p189 = por %p187, %p188
      %p190 = scmp.ne.s32.totalorder %s179, %s180
      %p191 = scmp.eq.s32.totalorder %s28, 0
      %p192 = por %p190, %p191
      %p193 = scmp.ne.s32.totalorder %s179, %s180
      %p194 = scmp.eq.s32.totalorder %s29, 1
      %p195 = por %p193, %p194
      %p197 = scmp.ne.s32.totalorder %s180, %s196
      %p198 = scmp.eq.s32.totalorder %s29, 0
      %p199 = por %p197, %p198
      %s200 = smul.u32 %s32, %s31
      %s201 = smul.u32 %s41, %s45
      %s202 = ssub.s32 %s30, %s49
      %s203 = ssub.s32 %s200, %s201
      %s204 = sor.u32 %s202, %s203
      %p205 = scmp.eq.s32.totalorder %s204, 0
      %s207 = sadd.s32 %s206, 1
      %s208 = scalar_select %p205, %s206, %s207
      %p211 = pneg %p205
      %p212 = scmp.eq.s32.totalorder %s23, 1
      %p213 = por %p211, %p212
      %p214 = scmp.ne.s32.totalorder %s206, %s209
      %p215 = scmp.eq.s32.totalorder %s23, 0
      %p216 = por %p214, %p215
      %p217 = scmp.ne.s32.totalorder %s206, %s209
      %p218 = scmp.eq.s32.totalorder %s28, 1
      %p219 = por %p217, %p218
      %p220 = scmp.ne.s32.totalorder %s209, %s210
      %p221 = scmp.eq.s32.totalorder %s28, 0
      %p222 = por %p220, %p221
      %p223 = scmp.ne.s32.totalorder %s209, %s210
      %p224 = scmp.eq.s32.totalorder %s29, 1
      %p225 = por %p223, %p224
      %p227 = scmp.ne.s32.totalorder %s210, %s226
      %p228 = scmp.eq.s32.totalorder %s29, 0
      %p229 = por %p227, %p228
      %p230 = scmp.le.s32.totalorder 1, %s23
      %p231 = scmp.lt.s32.totalorder %s23, 3
      %p232 = pnand %p230, %p231
      %p233 = pneg %p232
      // Predicated region
      $region9: #{tpu_custom_call.1} parent=5 // pred_check
        _
      $region10: #{tpu_custom_call.1} parent=5 // pred_check_branch
        %235 = sbr.rel (%p232) target = $region12
      $region11: #{tpu_custom_call.1} parent=5 // pred_region
        %s236 = ssub.s32 %s23, 1
      $region12: #{tpu_custom_call.1} parent=5 // pred_fallthru
        _
      %p237 = scmp.lt.s32.totalorder %s23, 2
      // Predicated region
      $region13: #{tpu_custom_call.1} parent=5 // pred_check
        %p238 = pneg %p237
      $region14: #{tpu_custom_call.1} parent=5 // pred_check_branch
        %240 = sbr.rel (%p238) target = $region16
      $region15: #{tpu_custom_call.1} parent=5 // pred_region
        // Predicated region
        $region17: #{tpu_custom_call.1} parent=15 // pred_check
          %p241 = pneg %p68
        $region18: #{tpu_custom_call.1} parent=15 // pred_check_branch
          %243 = sbr.rel (%p241) target = $region20
        $region19: #{tpu_custom_call.1} parent=15 // pred_region
          %s244 = sand.u32 %s58, 1
          %s245 = scalar_lea.sflag [#allocation4], %s244
          %s246 = sand.u32 %s58, 1
          %s247 = smul.addr %s246, 16
          %s248 = scalar_lea.vmem [#allocation3], %s247
          %s249 = ssub.s32 1, %s31
          %s250 = smul.u32 %s32, %s249
          %s251 = smul.u32 2, %s250
          %s253 = ssub.s32 256, 256
          %254 = vsyncadd %s245, %s253
          %s255 = smul.addr %s30, 2
          %s256 = sadd.s32 %s251, %s255
          %s257 = smul.addr %s256, 128
          %s258 = scalar_lea.hbm %s0, %s257
          %s260 = sshll.u32 %s248, 4
          %s261 = int_to_ptr.vmem [resolvable:$true] %s260
          %263 = dma.hbm_to_vmem [thread:$0]  %s258, 256, %s261, %s245
        $region20: #{tpu_custom_call.1} parent=15 // pred_fallthru
          _
        // Predicated region
        $region21: #{tpu_custom_call.1} parent=15 // pred_check
          %p264 = pneg %p100
        $region22: #{tpu_custom_call.1} parent=15 // pred_check_branch
          %266 = sbr.rel (%p264) target = $region24
        $region23: #{tpu_custom_call.1} parent=15 // pred_region
          %s267 = sand.u32 %s23, 1
          %s268 = scalar_lea.sflag [#allocation7], %s267
          %s269 = sand.u32 %s90, 1
          %s270 = smul.addr %s269, 16
          %s271 = scalar_lea.vmem [#allocation6], %s270
          %s272 = ssub.s32 1, %s31
          %s273 = smul.u32 %s32, %s272
          %s274 = smul.u32 2, %s273
          %s276 = ssub.s32 256, 256
          %277 = vsyncadd %s268, %s276
          %s278 = smul.addr %s30, 2
          %s279 = sadd.s32 %s274, %s278
          %s280 = smul.addr %s279, 128
          %s281 = scalar_lea.hbm %s1, %s280
          %s283 = sshll.u32 %s271, 4
          %s284 = int_to_ptr.vmem [resolvable:$true] %s283
          %286 = dma.hbm_to_vmem [thread:$0]  %s281, 256, %s284, %s268
        $region24: #{tpu_custom_call.1} parent=15 // pred_fallthru
          _
        // Predicated region
        $region25: #{tpu_custom_call.1} parent=15 // pred_check
          %p287 = pneg %p130
        $region26: #{tpu_custom_call.1} parent=15 // pred_check_branch
          %289 = sbr.rel (%p287) target = $region28
        $region27: #{tpu_custom_call.1} parent=15 // pred_region
          %s290 = sand.u32 %s23, 1
          %s291 = scalar_lea.sflag [#allocation7], %s290
          %s292 = sand.u32 %s120, 1
          %s293 = smul.addr %s292, 128
          %s294 = scalar_lea.vmem [#allocation8], %s293
          %s295 = ssub.s32 1, %s31
          %s296 = smul.u32 %s32, %s295
          %s297 = smul.u32 32, %s296
          %s299 = ssub.s32 2048, 2048
          %300 = vsyncadd %s291, %s299
          %s301 = smul.addr %s297, 64
          %s302 = scalar_lea.hbm %s2, %s301
          %s303 = sshll.u32 %s294, 4
          %s304 = int_to_ptr.vmem [resolvable:$true] %s303
          %309 = dma.hbm_to_vmem [thread:$0]  %s302, 2048, %s304, %s291, 64, 64, 4
        $region28: #{tpu_custom_call.1} parent=15 // pred_fallthru
          _
        // Predicated region
        $region29: #{tpu_custom_call.1} parent=15 // pred_check
          %p310 = pneg %p158
        $region30: #{tpu_custom_call.1} parent=15 // pred_check_branch
          %312 = sbr.rel (%p310) target = $region32
        $region31: #{tpu_custom_call.1} parent=15 // pred_region
          %s313 = sand.u32 %s148, 1
          %s314 = scalar_lea.sflag [#allocation10], %s313
          %s315 = sand.u32 %s148, 1
          %s316 = smul.addr %s315, 128
          %s317 = scalar_lea.vmem [#allocation9], %s316
          %s318 = smul.u32 %s32, %s31
          %s319 = smul.u32 2, %s318
          %s321 = ssub.s32 2048, 2048
          %322 = vsyncadd %s314, %s321
          %s323 = smul.addr %s319, 64
          %s324 = scalar_lea.hbm %s3, %s323
          %s325 = sshll.u32 %s317, 4
          %s326 = int_to_ptr.vmem [resolvable:$true] %s325
          %331 = dma.hbm_to_vmem [thread:$0]  %s324, 2048, %s326, %s314, 128, 128, 8
        $region32: #{tpu_custom_call.1} parent=15 // pred_fallthru
          _
        // Predicated region
        $region33: #{tpu_custom_call.1} parent=15 // pred_check
          %p332 = pneg %p186
        $region34: #{tpu_custom_call.1} parent=15 // pred_check_branch
          %334 = sbr.rel (%p332) target = $region36
        $region35: #{tpu_custom_call.1} parent=15 // pred_region
          %s335 = smul.u32 %s32, %s31
          %s336 = smul.u32 2, %s335
          %p337 = scmp.lt.s32.totalorder %s336, 1
          %s338 = scalar_select %p337, %s336, 1
          %s339 = scalar_lea.vmem %s4, %s338
          %s340 = smul.u32 %s32, %s31
          %s341 = smul.u32 2, %s340
        $region36: #{tpu_custom_call.1} parent=15 // pred_fallthru
          _
      $region16: #{tpu_custom_call.1} parent=5 // pred_fallthru
        _
      %p342 = scmp.le.s32.totalorder 1, %s23
      %p343 = scmp.lt.s32.totalorder %s23, 3
      %p344 = pnand %p342, %p343
      %p345 = pneg %p344
      // Predicated region
      $region37: #{tpu_custom_call.1} parent=5 // pred_check
        _
      $region38: #{tpu_custom_call.1} parent=5 // pred_check_branch
        %347 = sbr.rel (%p344) target = $region40
      $region39: #{tpu_custom_call.1} parent=5 // pred_region
        %s348 = ssub.s32 %s23, 1
        %s349 = sand.u32 %s61, 1
        %s350 = scalar_lea.sflag [#allocation4], %s349
        %s351 = sand.u32 %s61, 1
        %s352 = smul.addr %s351, 16
        %s353 = scalar_lea.vmem [#allocation3], %s352
        // Predicated region
        $region41: #{tpu_custom_call.1} parent=39 // pred_check
          %p354 = pneg %p74
        $region42: #{tpu_custom_call.1} parent=39 // pred_check_branch
          %356 = sbr.rel (%p354) target = $region44
        $region43: #{tpu_custom_call.1} parent=39 // pred_region
          %357 = dma.done %s350, 256
        $region44: #{tpu_custom_call.1} parent=39 // pred_fallthru
          _
        %s358 = sand.u32 %s28, 1
        %s359 = scalar_lea.sflag [#allocation7], %s358
        %s360 = sand.u32 %s93, 1
        %s361 = smul.addr %s360, 16
        %s362 = scalar_lea.vmem [#allocation6], %s361
        // Predicated region
        $region45: #{tpu_custom_call.1} parent=39 // pred_check
          %p363 = pneg %p106
        $region46: #{tpu_custom_call.1} parent=39 // pred_check_branch
          %365 = sbr.rel (%p363) target = $region48
        $region47: #{tpu_custom_call.1} parent=39 // pred_region
          %366 = dma.done %s359, 256
        $region48: #{tpu_custom_call.1} parent=39 // pred_fallthru
          _
        %s367 = sand.u32 %s28, 1
        %s368 = scalar_lea.sflag [#allocation7], %s367
        %s369 = sand.u32 %s123, 1
        %s370 = smul.addr %s369, 128
        %s371 = scalar_lea.vmem [#allocation8], %s370
        // Predicated region
        $region49: #{tpu_custom_call.1} parent=39 // pred_check
          %p372 = pneg %p136
        $region50: #{tpu_custom_call.1} parent=39 // pred_check_branch
          %374 = sbr.rel (%p372) target = $region52
        $region51: #{tpu_custom_call.1} parent=39 // pred_region
          %375 = dma.done %s368, 2048
        $region52: #{tpu_custom_call.1} parent=39 // pred_fallthru
          _
        %s376 = sand.u32 %s151, 1
        %s377 = scalar_lea.sflag [#allocation10], %s376
        %s378 = sand.u32 %s151, 1
        %s379 = smul.addr %s378, 128
        %s380 = scalar_lea.vmem [#allocation9], %s379
        // Predicated region
        $region53: #{tpu_custom_call.1} parent=39 // pred_check
          %p381 = pneg %p164
        $region54: #{tpu_custom_call.1} parent=39 // pred_check_branch
          %383 = sbr.rel (%p381) target = $region56
        $region55: #{tpu_custom_call.1} parent=39 // pred_region
          %384 = dma.done %s377, 2048
        $region56: #{tpu_custom_call.1} parent=39 // pred_fallthru
          _
        %s385 = sand.u32 %s61, 1
        %s386 = scalar_lea.sflag [#allocation4], %s385
        %s387 = sand.u32 %s61, 1
        %s388 = smul.addr %s387, 16
        %s389 = scalar_lea.vmem [#allocation3], %s388
        %p390 = pneg %p74
        %p391 = pneg %p71
        %s392 = sand.u32 %s28, 1
        %s393 = scalar_lea.sflag [#allocation7], %s392
        %s394 = sand.u32 %s93, 1
        %s395 = smul.addr %s394, 16
        %s396 = scalar_lea.vmem [#allocation6], %s395
        %p397 = pneg %p106
        %p398 = pneg %p103
        %s399 = sand.u32 %s28, 1
        %s400 = scalar_lea.sflag [#allocation7], %s399
        %s401 = sand.u32 %s123, 1
        %s402 = smul.addr %s401, 128
        %s403 = scalar_lea.vmem [#allocation8], %s402
        %p404 = pneg %p136
        %p405 = pneg %p133
        %s406 = sand.u32 %s151, 1
        %s407 = scalar_lea.sflag [#allocation10], %s406
        %s408 = sand.u32 %s151, 1
        %s409 = smul.addr %s408, 128
        %s410 = scalar_lea.vmem [#allocation9], %s409
        %p411 = pneg %p164
        %p412 = pneg %p161
        %s413 = smul.u32 %s35, %s34
        %s414 = smul.u32 2, %s413
        %p415 = scmp.lt.s32.totalorder %s414, 1
        %s416 = scalar_select %p415, %s414, 1
        %s417 = scalar_lea.vmem %s4, %s416
        %p418 = pneg %p192
        %p419 = pneg %p189
        %p420 = pneg %p222
        %p421 = pneg %p219
        %s422 = sand.u32 %s209, 1
        %s423 = scalar_lea.sflag [#allocation5], %s422
        %s424 = sand.u32 %s209, 1
        %s425 = smul.addr %s424, 16
        %s426 = scalar_lea.vmem [#allocation11], %s425
        %s427 = ssub.s32 1, %s34
        %s428 = smul.u32 %s35, %s427
        %s429 = smul.u32 2, %s428
        %s430 = ssub.s32 1, %s34
        %s431 = smul.u32 %s35, %s430
        %s432 = smul.u32 2, %s431
        %s433 = ssub.s32 1, %s34
        %s434 = smul.u32 %s35, %s433
        %s435 = smul.u32 32, %s434
        %s436 = smul.u32 %s35, %s34
        %s437 = smul.u32 2, %s436
        %s438 = smul.u32 %s35, %s34
        %s439 = smul.u32 2, %s438
        %p440 = scmp.lt.s32.totalorder %s439, 1
        %s441 = scalar_select %p440, %s439, 1
        %s442 = scalar_lea.vmem %s4, %s441
        %s443 = smul.u32 %s35, %s34
        %s444 = smul.u32 2, %s443
        %s445 = smul.u32 %s35, %s34
        %s446 = smul.u32 2, %s445
        %p448 = scmp.eq.s32.totalorder %s34, 0
        // Predicated region
        $region57: #{tpu_custom_call.1} parent=39 // pred_check
          %p449 = pneg %p448
        $region58: #{tpu_custom_call.1} parent=39 // pred_check_branch
          %451 = sbr.rel (%p449) target = $region60
        $region59: #{tpu_custom_call.1} parent=39 // pred_region
          %p452 = scmp.eq.s32.totalorder %s35, 0
          // Predicated region
          $region61: #{tpu_custom_call.1} parent=59 // pred_check
            %p453 = pneg %p452
          $region62: #{tpu_custom_call.1} parent=59 // pred_check_branch
            %455 = sbr.rel (%p453) target = $region64
          $region63: #{tpu_custom_call.1} parent=59 // pred_region
            %456 = vst [vmem:[#allocation2] sm:$0xff] 0.0
          $region64: #{tpu_custom_call.1} parent=59 // pred_fallthru
            _
          %v457 = vld [vmem:[%s371] sm:$0xf]
          %v458 = vld [vmem:[%s371 + $0x4] sm:$0xf]
          %v459 = vld [vmem:[%s371 + $0x8] sm:$0xf]
          %v460 = vld [vmem:[%s371 + $0xc] sm:$0xf]
          %v461 = vld [vmem:[%s371 + $0x10] sm:$0xf]
          %v462 = vld [vmem:[%s371 + $0x14] sm:$0xf]
          %v463 = vld [vmem:[%s371 + $0x18] sm:$0xf]
          %v464 = vld [vmem:[%s371 + $0x1c] sm:$0xf]
          %v465 = vld [vmem:[%s371 + $0x20] sm:$0xf]
          %v466 = vld [vmem:[%s371 + $0x24] sm:$0xf]
          %v467 = vld [vmem:[%s371 + $0x28] sm:$0xf]
          %v468 = vld [vmem:[%s371 + $0x2c] sm:$0xf]
          %v469 = vld [vmem:[%s371 + $0x30] sm:$0xf]
          %v470 = vld [vmem:[%s371 + $0x34] sm:$0xf]
          %v471 = vld [vmem:[%s371 + $0x38] sm:$0xf]
          %v472 = vld [vmem:[%s371 + $0x3c] sm:$0xf]
          %v473 = vld [vmem:[%s371 + $0x40] sm:$0xf]
          %v474 = vld [vmem:[%s371 + $0x44] sm:$0xf]
          %v475 = vld [vmem:[%s371 + $0x48] sm:$0xf]
          %v476 = vld [vmem:[%s371 + $0x4c] sm:$0xf]
          %v477 = vld [vmem:[%s371 + $0x50] sm:$0xf]
          %v478 = vld [vmem:[%s371 + $0x54] sm:$0xf]
          %v479 = vld [vmem:[%s371 + $0x58] sm:$0xf]
          %v480 = vld [vmem:[%s371 + $0x5c] sm:$0xf]
          %v481 = vld [vmem:[%s371 + $0x60] sm:$0xf]
          %v482 = vld [vmem:[%s371 + $0x64] sm:$0xf]
          %v483 = vld [vmem:[%s371 + $0x68] sm:$0xf]
          %v484 = vld [vmem:[%s371 + $0x6c] sm:$0xf]
          %v485 = vld [vmem:[%s371 + $0x70] sm:$0xf]
          %v486 = vld [vmem:[%s371 + $0x74] sm:$0xf]
          %v487 = vld [vmem:[%s371 + $0x78] sm:$0xf]
          %v488 = vld [vmem:[%s371 + $0x7c] sm:$0xf]
          %v489 = vld [vmem:[%s353] sm:$0xff]
          %v490 = vld [vmem:[%s353 + $0x8] sm:$0xff]
          %v491 = vld [vmem:[%s362] sm:$0xff]
          %v492 = vld [vmem:[%s362 + $0x8] sm:$0xff]
          %v493 = vmul.f32 %v489, %v491
          %v494 = vmul.f32 %v490, %v492
          %v495 = vld [vmem:[#allocation2] sm:$0xff]
          %v496 = vpack.c.bf16 %v493, %v493
          %v497 = vpack.c.bf16 %v494, %v494
          %v530 = vunpack.c.l.b16 %v457
          %v531 = vunpack.c.l.b16 %v458
          %v532 = vunpack.c.l.b16 %v459
          %v533 = vunpack.c.l.b16 %v460
          %v534 = vunpack.c.l.b16 %v461
          %v535 = vunpack.c.l.b16 %v462
          %v536 = vunpack.c.l.b16 %v463
          %v537 = vunpack.c.l.b16 %v464
          %v538 = vunpack.c.l.b16 %v465
          %v539 = vunpack.c.l.b16 %v466
          %v540 = vunpack.c.l.b16 %v467
          %v541 = vunpack.c.l.b16 %v468
          %v542 = vunpack.c.l.b16 %v469
          %v543 = vunpack.c.l.b16 %v470
          %v544 = vunpack.c.l.b16 %v471
          %v545 = vunpack.c.l.b16 %v472
          %v546 = vunpack.c.l.b16 %v473
          %v547 = vunpack.c.l.b16 %v474
          %v548 = vunpack.c.l.b16 %v475
          %v549 = vunpack.c.l.b16 %v476
          %v550 = vunpack.c.l.b16 %v477
          %v551 = vunpack.c.l.b16 %v478
          %v552 = vunpack.c.l.b16 %v479
          %v553 = vunpack.c.l.b16 %v480
          %v554 = vunpack.c.l.b16 %v481
          %v555 = vunpack.c.l.b16 %v482
          %v556 = vunpack.c.l.b16 %v483
          %v557 = vunpack.c.l.b16 %v484
          %v558 = vunpack.c.l.b16 %v485
          %v559 = vunpack.c.l.b16 %v486
          %v560 = vunpack.c.l.b16 %v487
          %v561 = vunpack.c.l.b16 %v488
          %v562 = vpack.c.b16 %v531, %v530
          %v563 = vpack.c.b16 %v533, %v532
          %v564 = vpack.c.b16 %v535, %v534
          %v565 = vpack.c.b16 %v537, %v536
          %v566 = vpack.c.b16 %v539, %v538
          %v567 = vpack.c.b16 %v541, %v540
          %v568 = vpack.c.b16 %v543, %v542
          %v569 = vpack.c.b16 %v545, %v544
          %v570 = vpack.c.b16 %v547, %v546
          %v571 = vpack.c.b16 %v549, %v548
          %v572 = vpack.c.b16 %v551, %v550
          %v573 = vpack.c.b16 %v553, %v552
          %v574 = vpack.c.b16 %v555, %v554
          %v575 = vpack.c.b16 %v557, %v556
          %v576 = vpack.c.b16 %v559, %v558
          %v577 = vpack.c.b16 %v561, %v560
          %594 = vmatprep.subr.bf16.mxu0 0
          %595 = vmatpush1.bf16.msra.mxu0 %v569
          %596 = vmatprep.subr.bf16.mxu0 0
          %597 = vmatpush1.bf16.msra.mxu0 %v568
          %598 = vmatprep.subr.bf16.mxu0 0
          %599 = vmatpush1.bf16.msra.mxu0 %v567
          %600 = vmatprep.subr.bf16.mxu0 0
          %601 = vmatpush1.bf16.msra.mxu0 %v566
          %602 = vmatprep.subr.bf16.mxu0 0
          %603 = vmatpush1.bf16.msra.mxu0 %v565
          %604 = vmatprep.subr.bf16.mxu0 0
          %605 = vmatpush1.bf16.msra.mxu0 %v564
          %606 = vmatprep.subr.bf16.mxu0 0
          %607 = vmatpush1.bf16.msra.mxu0 %v563
          %608 = vmatprep.subr.bf16.mxu0 0
          %609 = vmatpush1.bf16.msra.mxu0 %v562
          %610 = vmatprep.subr.bf16.mxu0 0
          %611 = vmatpush2.bf16.msra.mxu0 %v577
          %612 = vmatprep.subr.bf16.mxu0 0
          %613 = vmatpush2.bf16.msra.mxu0 %v576
          %614 = vmatprep.subr.bf16.mxu0 0
          %615 = vmatpush2.bf16.msra.mxu0 %v575
          %616 = vmatprep.subr.bf16.mxu0 0
          %617 = vmatpush2.bf16.msra.mxu0 %v574
          %618 = vmatprep.subr.bf16.mxu0 0
          %619 = vmatpush2.bf16.msra.mxu0 %v573
          %620 = vmatprep.subr.bf16.mxu0 0
          %621 = vmatpush2.bf16.msra.mxu0 %v572
          %622 = vmatprep.subr.bf16.mxu0 0
          %623 = vmatpush2.bf16.msra.mxu0 %v571
          %624 = vmatprep.subr.bf16.mxu0 0
          %625 = vmatpush2.bf16.msra.mxu0 %v570
          %626 = vmatprep.mubr.bf16.mxu0 %v497
          %627 = vmatmul.mubr.bf16.gmra.mxu0 %v496
          %v628 = vpop.f32.mrf.mxu0
          %v629 = vadd.f32 0.0, %v628
          %v630 = vpop.f32.mrf.mxu0
          %v631 = vpop.f32.mrf.mxu0
          %v632 = vpop.f32.mrf.mxu0
          %633 = vdwg.mxu0
          %v634 = vadd.f32 %v495, %v629
          %635 = vst [vmem:[#allocation2] sm:$0xff] %v634
        $region60: #{tpu_custom_call.1} parent=39 // pred_fallthru
          _
        %p636 = scmp.eq.s32.totalorder %s34, 1
        // Predicated region
        $region65: #{tpu_custom_call.1} parent=39 // pred_check
          %p637 = pneg %p636
        $region66: #{tpu_custom_call.1} parent=39 // pred_check_branch
          %639 = sbr.rel (%p637) target = $region68
        $region67: #{tpu_custom_call.1} parent=39 // pred_region
          %v640 = vld [vmem:[%s380] sm:$0xff]
          %v641 = vld [vmem:[%s380 + $0x8] sm:$0xff]
          %v642 = vld [vmem:[%s380 + $0x10] sm:$0xff]
          %v643 = vld [vmem:[%s380 + $0x18] sm:$0xff]
          %v644 = vld [vmem:[%s380 + $0x20] sm:$0xff]
          %v645 = vld [vmem:[%s380 + $0x28] sm:$0xff]
          %v646 = vld [vmem:[%s380 + $0x30] sm:$0xff]
          %v647 = vld [vmem:[%s380 + $0x38] sm:$0xff]
          %v648 = vld [vmem:[%s380 + $0x40] sm:$0xff]
          %v649 = vld [vmem:[%s380 + $0x48] sm:$0xff]
          %v650 = vld [vmem:[%s380 + $0x50] sm:$0xff]
          %v651 = vld [vmem:[%s380 + $0x58] sm:$0xff]
          %v652 = vld [vmem:[%s380 + $0x60] sm:$0xff]
          %v653 = vld [vmem:[%s380 + $0x68] sm:$0xff]
          %v654 = vld [vmem:[%s380 + $0x70] sm:$0xff]
          %v655 = vld [vmem:[%s380 + $0x78] sm:$0xff]
          %v656 = vld [vmem:[#allocation2] sm:$0xff]
          %v657 = vpack.c.bf16 %v656, %v656
          %v658 = vld [vmem:[%s442] sm:$0x3]
          %v660 = vlaneseq
          %v661 = vshrl.u32 %v660, 7
          %v662 = vsub.s32 0, %v661
          %v663 = vrot.slane %v658, %v662
          %v664 = vlaneseq
          %v665 = vshrl.u32 %v664, 7
          %v666 = vsub.s32 1, %v665
          %v667 = vrot.slane %v658, %v666
          %v686 = vunpack.c.l.b16 %v640
          %v687 = vunpack.c.h.b16 %v640
          %v688 = vunpack.c.l.b16 %v641
          %v689 = vunpack.c.h.b16 %v641
          %v690 = vunpack.c.l.b16 %v642
          %v691 = vunpack.c.h.b16 %v642
          %v692 = vunpack.c.l.b16 %v643
          %v693 = vunpack.c.h.b16 %v643
          %v694 = vunpack.c.l.b16 %v644
          %v695 = vunpack.c.h.b16 %v644
          %v696 = vunpack.c.l.b16 %v645
          %v697 = vunpack.c.h.b16 %v645
          %v698 = vunpack.c.l.b16 %v646
          %v699 = vunpack.c.h.b16 %v646
          %v700 = vunpack.c.l.b16 %v647
          %v701 = vunpack.c.h.b16 %v647
          %v702 = vunpack.c.l.b16 %v648
          %v703 = vunpack.c.h.b16 %v648
          %v704 = vunpack.c.l.b16 %v649
          %v705 = vunpack.c.h.b16 %v649
          %v706 = vunpack.c.l.b16 %v650
          %v707 = vunpack.c.h.b16 %v650
          %v708 = vunpack.c.l.b16 %v651
          %v709 = vunpack.c.h.b16 %v651
          %v710 = vunpack.c.l.b16 %v652
          %v711 = vunpack.c.h.b16 %v652
          %v712 = vunpack.c.l.b16 %v653
          %v713 = vunpack.c.h.b16 %v653
          %v714 = vunpack.c.l.b16 %v654
          %v715 = vunpack.c.h.b16 %v654
          %v716 = vunpack.c.l.b16 %v655
          %v717 = vunpack.c.h.b16 %v655
          %v718 = vpack.c.b16 %v688, %v686
          %v719 = vpack.c.b16 %v689, %v687
          %v720 = vpack.c.b16 %v692, %v690
          %v721 = vpack.c.b16 %v693, %v691
          %v722 = vpack.c.b16 %v696, %v694
          %v723 = vpack.c.b16 %v697, %v695
          %v724 = vpack.c.b16 %v700, %v698
          %v725 = vpack.c.b16 %v701, %v699
          %v726 = vpack.c.b16 %v704, %v702
          %v727 = vpack.c.b16 %v705, %v703
          %v728 = vpack.c.b16 %v708, %v706
          %v729 = vpack.c.b16 %v709, %v707
          %v730 = vpack.c.b16 %v712, %v710
          %v731 = vpack.c.b16 %v713, %v711
          %v732 = vpack.c.b16 %v716, %v714
          %v733 = vpack.c.b16 %v717, %v715
          %750 = vmatprep.subr.bf16.mxu0 %v733
          %751 = vmatpush1.bf16.msra.mxu0 %v732
          %752 = vmatprep.subr.bf16.mxu0 %v731
          %753 = vmatpush1.bf16.msra.mxu0 %v730
          %754 = vmatprep.subr.bf16.mxu0 %v729
          %755 = vmatpush1.bf16.msra.mxu0 %v728
          %756 = vmatprep.subr.bf16.mxu0 %v727
          %757 = vmatpush1.bf16.msra.mxu0 %v726
          %758 = vmatprep.subr.bf16.mxu0 %v725
          %759 = vmatpush1.bf16.msra.mxu0 %v724
          %760 = vmatprep.subr.bf16.mxu0 %v723
          %761 = vmatpush1.bf16.msra.mxu0 %v722
          %762 = vmatprep.subr.bf16.mxu0 %v721
          %763 = vmatpush1.bf16.msra.mxu0 %v720
          %764 = vmatprep.subr.bf16.mxu0 %v719
          %765 = vmatpush1.bf16.msra.mxu0 %v718
          %766 = vmatprep.subr.bf16.mxu0 0
          %767 = vmatpush2.bf16.msra.mxu0 0
          %768 = vmatprep.subr.bf16.mxu0 0
          %769 = vmatpush2.bf16.msra.mxu0 0
          %770 = vmatprep.subr.bf16.mxu0 0
          %771 = vmatpush2.bf16.msra.mxu0 0
          %772 = vmatprep.subr.bf16.mxu0 0
          %773 = vmatpush2.bf16.msra.mxu0 0
          %774 = vmatprep.subr.bf16.mxu0 0
          %775 = vmatpush2.bf16.msra.mxu0 0
          %776 = vmatprep.subr.bf16.mxu0 0
          %777 = vmatpush2.bf16.msra.mxu0 0
          %778 = vmatprep.subr.bf16.mxu0 0
          %779 = vmatpush2.bf16.msra.mxu0 0
          %780 = vmatprep.subr.bf16.mxu0 0
          %781 = vmatpush2.bf16.msra.mxu0 0
          %782 = vmatprep.mubr.bf16.mxu0 0
          %783 = vmatmul.mubr.bf16.gmra.mxu0 %v657
          %v784 = vpop.f32.mrf.mxu0
          %v785 = vadd.f32 %v663, %v784
          %v786 = vpop.f32.mrf.mxu0
          %v787 = vadd.f32 %v667, %v786
          %v788 = vpop.f32.mrf.mxu0
          %v789 = vpop.f32.mrf.mxu0
          %790 = vdwg.mxu0
          %791 = vst [vmem:[%s426] sm:$0xff] %v785
          %792 = vst [vmem:[%s426 + $0x8] sm:$0xff] %v787
        $region68: #{tpu_custom_call.1} parent=39 // pred_fallthru
          _
        %s793 = sand.u32 %s209, 1
        %s794 = scalar_lea.sflag [#allocation5], %s793
        %s795 = sand.u32 %s209, 1
        %s796 = smul.addr %s795, 16
        %s797 = scalar_lea.vmem [#allocation11], %s796
        // Predicated region
        $region69: #{tpu_custom_call.1} parent=39 // pred_check
          %p798 = pneg %p219
        $region70: #{tpu_custom_call.1} parent=39 // pred_check_branch
          %800 = sbr.rel (%p798) target = $region72
        $region71: #{tpu_custom_call.1} parent=39 // pred_region
          %s801 = smul.u32 %s35, %s34
          %s802 = smul.u32 2, %s801
          %s804 = ssub.s32 256, 256
          %805 = vsyncadd %s794, %s804
          %s806 = smul.addr %s33, 2
          %s807 = sadd.s32 %s802, %s806
          %s808 = smul.addr %s807, 128
          %s809 = scalar_lea.hbm %s5, %s808
          %s811 = sshll.u32 %s797, 4
          %s812 = int_to_ptr.vmem [resolvable:$true] %s811
          %814 = dma.vmem_to_hbm [thread:$0]  %s812, 256, %s809, %s794
        $region72: #{tpu_custom_call.1} parent=39 // pred_fallthru
          _
      $region40: #{tpu_custom_call.1} parent=5 // pred_fallthru
        _
      %p815 = scmp.le.s32.totalorder 2, %s23
      // Predicated region
      $region73: #{tpu_custom_call.1} parent=5 // pred_check
        %p816 = pneg %p815
      $region74: #{tpu_custom_call.1} parent=5 // pred_check_branch
        %818 = sbr.rel (%p816) target = $region76
      $region75: #{tpu_custom_call.1} parent=5 // pred_region
        %s819 = ssub.s32 %s23, 2
        // Predicated region
        $region77: #{tpu_custom_call.1} parent=75 // pred_check
          %p820 = pneg %p225
        $region78: #{tpu_custom_call.1} parent=75 // pred_check_branch
          %822 = sbr.rel (%p820) target = $region80
        $region79: #{tpu_custom_call.1} parent=75 // pred_region
          %s823 = sand.u32 %s210, 1
          %s824 = scalar_lea.sflag [#allocation5], %s823
          %s825 = sand.u32 %s210, 1
          %s826 = smul.addr %s825, 16
          %s827 = scalar_lea.vmem [#allocation11], %s826
          %828 = dma.done %s824, 256
        $region80: #{tpu_custom_call.1} parent=75 // pred_fallthru
          _
      $region76: #{tpu_custom_call.1} parent=5 // pred_fallthru
        _
    $region6: #{tpu_custom_call.1} parent=1 // loop_footer
      %s27 = sadd.s32 1, %s23
    $region7: #{tpu_custom_call.1} parent=1 // loop_footer_branch
      %22 = sbr.rel target = $region3
    $region8: #{tpu_custom_call.1} parent=1 // loop_exit
      _
    %829 = vsyncpa [#allocation4], 1
    %s830 = scalar_lea.sflag [#allocation4], 1
    %831 = vsyncpa %s830, 1
    %832 = vsyncpa [#allocation7], 1
    %s833 = scalar_lea.sflag [#allocation7], 1
    %834 = vsyncpa %s833, 1
    %835 = vsyncpa [#allocation10], 1
    %s836 = scalar_lea.sflag [#allocation10], 1
    %837 = vsyncpa %s836, 1
    %838 = vsyncpa [#allocation5], 1
    %s839 = scalar_lea.sflag [#allocation5], 1
    %840 = vsyncpa %s839, 1

</llo_original>
